<compile_context>
chip_gen: v5e
topology: v5e:2x2
jax: 0.10.0
libtpu: 0.0.40
codegen_flags: <defaults>
</compile_context>

<pallas_src>
import math
import functools

import jax
import jax.numpy as jnp
from jax.experimental import pallas as pl
from jax.experimental.pallas import tpu as pltpu


_LANES = 512                      # lane-dense last dim (multiple of 128)
_TILE_BYTES = 4 * 1024 * 1024     # per-tile VMEM budget; x4 (in+out, double-buffered) = 16 MiB


def _round_up(x: int, m: int) -> int:
    return ((x + m - 1) // m) * m


def _scale_kernel(c_ref, w_ref, o_ref):
    # c_ref: (1,) f32 scalar in SMEM; w_ref / o_ref: (tile_r, _LANES) VMEM tiles.
    # Multiply in f32 (matches the PyTorch float scalar) and cast back to the weight dtype.
    o_ref[...] = (w_ref[...] * c_ref[0]).astype(o_ref.dtype)


@jax.jit
def equalized_weight_forward(weight: jax.Array) -> jax.Array:
    """Return weight * (1 / sqrt(prod(shape[1:]))) computed in a Pallas kernel."""
    orig_shape = weight.shape
    total = 1
    for d in orig_shape:
        total *= d
    fan_in = 1
    for d in orig_shape[1:]:
        fan_in *= d
    c = jnp.asarray([1.0 / math.sqrt(float(fan_in))], dtype=jnp.float32)

    dtype_bytes = jnp.dtype(weight.dtype).itemsize
    # Sublane packing: f32 -> 8, bf16 -> 16, int8/fp8 -> 32 rows per vreg.
    sublane = max(8, 32 // dtype_bytes)

    # Largest tile (in rows) that fits the per-tile VMEM budget, multiple of the sublane pack.
    row_bytes = _LANES * dtype_bytes
    tile_cap = max(sublane, (_TILE_BYTES // row_bytes) // sublane * sublane)

    rows_needed = -(-total // _LANES)  # cdiv
    tile_r = min(_round_up(rows_needed, sublane), tile_cap)
    # Prefer >=2 grid steps when there is enough work (lets v7x shard across its 2 TCs).
    if rows_needed > 2 * sublane and rows_needed <= tile_r:
        tile_r = min(_round_up(-(-rows_needed // 2), sublane), tile_cap)

    rows = _round_up(rows_needed, tile_r)
    padded_total = rows * _LANES
    grid = (rows // tile_r,)

    w_flat = weight.reshape(-1)
    if padded_total != total:
        w_flat = jnp.pad(w_flat, (0, padded_total - total))
    w2d = w_flat.reshape(rows, _LANES)

    out2d = pl.pallas_call(
        _scale_kernel,
        out_shape=jax.ShapeDtypeStruct((rows, _LANES), weight.dtype),
        grid=grid,
        in_specs=[
            pl.BlockSpec(memory_space=pltpu.SMEM),                  # scalar c
            pl.BlockSpec((tile_r, _LANES), lambda i: (i, 0)),       # weight tile
        ],
        out_specs=pl.BlockSpec((tile_r, _LANES), lambda i: (i, 0)),
        compiler_params=pltpu.CompilerParams(
            dimension_semantics=("parallel",),
            vmem_limit_bytes=32 * 1024 * 1024,
        ),
        cost_estimate=pl.CostEstimate(
            flops=rows * _LANES,
            transcendentals=0,
            bytes_accessed=2 * rows * _LANES * dtype_bytes,
        ),
    )(c, w2d)

    return out2d.reshape(-1)[:total].reshape(orig_shape)


if __name__ == "__main__":
    key = jax.random.PRNGKey(0)
    k0, k1 = jax.random.split(key)

    # Case 1: linear-style weight [out_features, in_features], f32.
    shape = (32, 64)
    weight = jax.random.normal(k0, shape, dtype=jnp.float32)
    c_val = 1.0 / math.sqrt(float(shape[1]))
    out = jax.block_until_ready(equalized_weight_forward(weight))
    ref = weight * jnp.float32(c_val)
    assert out.shape == weight.shape and out.dtype == weight.dtype
    assert jnp.allclose(out, ref, atol=1e-6, rtol=1e-6)

    # Case 2: conv-style weight [out_ch, in_ch, kh, kw], bf16 (exercises padding + dtype cast).
    shape2 = (8, 4, 3, 3)
    weight2 = jax.random.normal(k1, shape2, dtype=jnp.bfloat16)
    c_val2 = 1.0 / math.sqrt(float(4 * 3 * 3))
    out2 = jax.block_until_ready(equalized_weight_forward(weight2))
    ref2 = (weight2.astype(jnp.float32) * jnp.float32(c_val2)).astype(jnp.bfloat16)
    assert out2.shape == weight2.shape and out2.dtype == weight2.dtype
    assert jnp.allclose(out2.astype(jnp.float32), ref2.astype(jnp.float32),
                        atol=1e-2, rtol=1e-2)

    print("KERNEL_OK")
</pallas_src>

<mosaic_0001>
module attributes {stable_mosaic.version = 11 : i64} {
  func.func @_scale_kernel(%arg0: i32, %arg1: memref<1xf32, #tpu.memory_space<smem>>, %arg2: memref<8x512xf32, #tpu.memory_space<vmem>>, %arg3: memref<8x512xf32, #tpu.memory_space<vmem>>) attributes {dimension_semantics = [#tpu.dimension_semantics<parallel>], iteration_bounds = array<i64: 1>, scalar_prefetch = 0 : i64, scratch_operands = 0 : i64, tpu.core_type = #tpu.core_type<tc>, window_params = [{transform_indices = @transform_0, window_bounds = array<i64: 1>}, {transform_indices = @transform_1, window_bounds = array<i64: 8, 512>}, {transform_indices = @transform_2, window_bounds = array<i64: 8, 512>}]} {
    %c0 = arith.constant 0 : index
    %c0_0 = arith.constant 0 : index
    %0 = vector.load %arg2[%c0, %c0_0] : memref<8x512xf32, #tpu.memory_space<vmem>>, vector<8x512xf32>
    %c0_1 = arith.constant 0 : index
    %1 = memref.load %arg1[%c0_1] : memref<1xf32, #tpu.memory_space<smem>>
    %2 = vector.broadcast %1 : f32 to vector<8x512xf32>
    %3 = arith.mulf %0, %2 : vector<8x512xf32>
    %c0_2 = arith.constant 0 : index
    %c0_3 = arith.constant 0 : index
    %4 = vector.load %arg3[%c0_2, %c0_3] : memref<8x512xf32, #tpu.memory_space<vmem>>, vector<8x512xf32>
    tpu.vector_store %arg3[%c0_2, %c0_3], %3 {strides = array<i32>} : memref<8x512xf32, #tpu.memory_space<vmem>>, vector<8x512xf32>,
    return
  }
  func.func @transform_0(%arg0: i32) -> i32 {
    %c0_i32 = arith.constant 0 : i32
    %c0_i32_0 = arith.constant 0 : i32
    return %c0_i32 : i32
  }
  func.func @transform_1(%arg0: i32) -> (i32, i32) {
    %c0_i32 = arith.constant 0 : i32
    %c0_i32_0 = arith.constant 0 : i32
    return %arg0, %c0_i32 : i32, i32
  }
  func.func @transform_2(%arg0: i32) -> (i32, i32) {
    %c0_i32 = arith.constant 0 : i32
    %c0_i32_0 = arith.constant 0 : i32
    return %arg0, %c0_i32 : i32, i32
  }
}

</mosaic_0001>

<llo_original>
// kernel: equalized_weight_forward.1
$region0: #{equalized_weight_forward.1}
  #allocation0 [shape = 'u32[]', space=smem, size = 0x4, offset = 0x4, fixed_abs, tag = 'smem constant byte address 0x4 - core index']
  #allocation1 [shape = 'u32[72,128]{1,0:T(1,128)}', space=vmem, size = 0x9000, scoped, tag = 'internal scratch']
  #allocation2 [shape = 'f32[1]{0:T(128)S(6)}', space=smem, size = 0x200, scoped, tag = 'scoped memory for equalized_weight_forward.1']
  %s0 = inlined_call_operand.<no memory space> [shape: f32[1], index: 0, kind: input, shape index: {}]
  %s1 = inlined_call_operand.vmem [shape: f32[8,512], index: 1, kind: input, shape index: {}]
  %s2 = inlined_call_operand.vmem [shape: f32[8,512], index: 2, kind: output, shape index: {}]
  %s3 = sld [smem:[#allocation0]]
  $region18: #{equalized_weight_forward.1} parent=0
    _
  %s5 = ssub.s32 1, %s3
  %s6 = scalar_select 0, %s5, %s3
  %7 = sst [smem:[#allocation2]] %s0
  // Predicated region
  $region2: #{equalized_weight_forward.1} parent=0 // pred_check
    _
  $region3: #{equalized_weight_forward.1} parent=0 // pred_check_branch
    %9 = sbr.rel (0) target = $region5
  $region4: #{equalized_weight_forward.1} parent=0 // pred_region
    _
  $region5: #{equalized_weight_forward.1} parent=0 // pred_fallthru
    _
  // Predicated region
  $region6: #{equalized_weight_forward.1} parent=0 // pred_check
    _
  $region7: #{equalized_weight_forward.1} parent=0 // pred_check_branch
    %11 = sbr.rel (0) target = $region9
  $region8: #{equalized_weight_forward.1} parent=0 // pred_region
    _
  $region9: #{equalized_weight_forward.1} parent=0 // pred_fallthru
    _
  %v12 = vld [vmem:[%s1] sm:$0xff]
  %v13 = vld [vmem:[%s1 + $0x8] sm:$0xff]
  %v14 = vld [vmem:[%s1 + $0x10] sm:$0xff]
  %v15 = vld [vmem:[%s1 + $0x18] sm:$0xff]
  %s16 = sld [smem:[#allocation2]]
  %v17 = vstv %s16
  %v18 = vmul.f32 %v12, %v17
  %v19 = vmul.f32 %v13, %v17
  %v20 = vmul.f32 %v14, %v17
  %v21 = vmul.f32 %v15, %v17
  %22 = vst [vmem:[%s2] sm:$0xff] %v18
  %23 = vst [vmem:[%s2 + $0x8] sm:$0xff] %v19
  %24 = vst [vmem:[%s2 + $0x10] sm:$0xff] %v20
  %25 = vst [vmem:[%s2 + $0x18] sm:$0xff] %v21
  // Predicated region
  $region10: #{equalized_weight_forward.1} parent=0 // pred_check
    _
  $region11: #{equalized_weight_forward.1} parent=0 // pred_check_branch
    %27 = sbr.rel (0) target = $region13
  $region12: #{equalized_weight_forward.1} parent=0 // pred_region
    _
  $region13: #{equalized_weight_forward.1} parent=0 // pred_fallthru
    _
  // Predicated region
  $region14: #{equalized_weight_forward.1} parent=0 // pred_check
    _
  $region15: #{equalized_weight_forward.1} parent=0 // pred_check_branch
    %29 = sbr.rel (0) target = $region17
  $region16: #{equalized_weight_forward.1} parent=0 // pred_region
    _
  $region17: #{equalized_weight_forward.1} parent=0 // pred_fallthru
    _

</llo_original>
